<compile_context>
chip_gen: v7x
topology: tpu7x:2x2x1
jax: 0.10.0
libtpu: 0.0.40
codegen_flags: <defaults>
</compile_context>

<pallas_src>
import functools

import numpy as np

import jax
import jax.numpy as jnp
from jax.experimental import pallas as pl
from jax.experimental.pallas import tpu as pltpu


# ----------------------------------------------------------------------------
# Model configuration (matches the PyTorch AutoEncoder instantiation).
# ----------------------------------------------------------------------------
INPUT_DIM = (1, 16, 16)       # (C, H, W)
CONV_FILTERS = (4, 8)
CONV_T_FILTERS = (4, 1)
KERNEL_SIZES = (3, 3)
STRIDES = (2, 2)
Z_DIM = 8

MATMUL_DTYPE = jnp.bfloat16   # MXU input dtype (f32 accumulation). Use
                              # jnp.float32 for bit-faithful f32 numerics.


def _derive_arch():
    """Mirror AutoEncoder._build's shape / padding / output_padding arithmetic."""
    c0, h0, _ = INPUT_DIM
    paddings = [(k - 1) // 2 for k in KERNEL_SIZES]

    enc = []                     # (cin, cout, k, stride, pad, spatial_in)
    sizes = [h0]                 # spatial size before each conv (+ final)
    for i, (cout, k, s, p) in enumerate(
            zip(CONV_FILTERS, KERNEL_SIZES, STRIDES, paddings)):
        cin = c0 if i == 0 else CONV_FILTERS[i - 1]
        enc.append((cin, cout, k, s, p, sizes[-1]))
        sizes.append((sizes[-1] + 2 * p - k) // s + 1)
    shape_before_flatten = (CONV_FILTERS[-1], sizes[-1], sizes[-1])

    dec = []                     # (cin, cout, k, stride, pad, out_pad, spatial_in)
    t_ks, t_st = KERNEL_SIZES[::-1], STRIDES[::-1]
    cur = sizes[-1]
    for i, (cout, k, s) in enumerate(zip(CONV_T_FILTERS, t_ks, t_st)):
        conv_pad = paddings[-i - 1]
        pad = k - conv_pad - 1
        out_pad = (sizes[-i - 2] + 2 * conv_pad - k) % s
        cin = CONV_FILTERS[-1] if i == 0 else CONV_T_FILTERS[i - 1]
        dec.append((cin, cout, k, s, pad, out_pad, cur))
        cur = (cur - 1) * s - 2 * pad + k + out_pad
    return enc, shape_before_flatten, dec


# ----------------------------------------------------------------------------
# One-time weight preparation: fold each Conv2d / ConvTranspose2d into an
# equivalent dense matrix acting on NCHW-flattened activations.
# (Host-side, O(#params) work, done once outside the hot path.)
# ----------------------------------------------------------------------------
def _conv2d_as_dense(w, b, spatial, stride, padding):
    """nn.Conv2d over a (Cin, S, S) input -> (A, bias);
    A: (Cin*S*S, Cout*So*So), NCHW (channel-major) flattening on both sides."""
    w = np.asarray(w, np.float32)
    b = np.asarray(b, np.float32)
    c_out, c_in, k, _ = w.shape
    s_in = spatial
    s_out = (s_in + 2 * padding - k) // stride + 1
    a = np.zeros((c_in, s_in, s_in, c_out, s_out, s_out), np.float32)
    for ho in range(s_out):
        for wo in range(s_out):
            for di in range(k):
                for dj in range(k):
                    hi = stride * ho - padding + di
                    wi = stride * wo - padding + dj
                    if 0 <= hi < s_in and 0 <= wi < s_in:
                        a[:, hi, wi, :, ho, wo] += w[:, :, di, dj].T
    return (a.reshape(c_in * s_in * s_in, c_out * s_out * s_out),
            np.repeat(b, s_out * s_out))


def _conv_transpose2d_as_dense(w, b, spatial, stride, padding, output_padding):
    """nn.ConvTranspose2d over a (Cin, S, S) input -> (A, bias);
    w has PyTorch layout (Cin, Cout, k, k)."""
    w = np.asarray(w, np.float32)
    b = np.asarray(b, np.float32)
    c_in, c_out, k, _ = w.shape
    s_in = spatial
    s_out = (s_in - 1) * stride - 2 * padding + k + output_padding
    a = np.zeros((c_in, s_in, s_in, c_out, s_out, s_out), np.float32)
    for hi in range(s_in):
        for wi in range(s_in):
            for di in range(k):
                for dj in range(k):
                    ho = stride * hi - padding + di
                    wo = stride * wi - padding + dj
                    if 0 <= ho < s_out and 0 <= wo < s_out:
                        a[:, hi, wi, :, ho, wo] += w[:, :, di, dj]
    return (a.reshape(c_in * s_in * s_in, c_out * s_out * s_out),
            np.repeat(b, s_out * s_out))


def prepare_dense_params(params, matmul_dtype=MATMUL_DTYPE):
    """Fold convs into dense operators.  Returns a flat tuple
    (w1, b1, ..., w6, b6): weights in `matmul_dtype`, biases f32 of shape (1, F)."""
    enc, _, dec = _derive_arch()
    layers = []
    for i, (cin, cout, k, s, p, sp) in enumerate(enc):
        layers.append(_conv2d_as_dense(
            params[f"conv{i+1}_w"], params[f"conv{i+1}_b"], sp, s, p))
    layers.append((np.asarray(params["enc_lin_w"], np.float32),
                   np.asarray(params["enc_lin_b"], np.float32)))
    layers.append((np.asarray(params["dec_lin_w"], np.float32),
                   np.asarray(params["dec_lin_b"], np.float32)))
    for i, (cin, cout, k, s, p, op, sp) in enumerate(dec):
        layers.append(_conv_transpose2d_as_dense(
            params[f"convt{i+1}_w"], params[f"convt{i+1}_b"], sp, s, p, op))
    flat = []
    for a, c in layers:
        flat.append(jnp.asarray(a, matmul_dtype))
        flat.append(jnp.asarray(np.asarray(c, np.float32).reshape(1, -1)))
    return tuple(flat)


# ----------------------------------------------------------------------------
# Fused Pallas kernel: the whole 6-layer forward for one batch tile.
# ----------------------------------------------------------------------------
_LAYER_ACTS = ("leaky_relu", "leaky_relu", "none", "none", "leaky_relu", "sigmoid")


def _fused_ae_kernel(x_ref, *refs):
    o_ref = refs[-1]
    wb = refs[:-1]                       # (w1, b1, ..., w6, b6), VMEM-resident
    h = x_ref[...]                       # (tb, 256) f32
    for i, act in enumerate(_LAYER_ACTS):
        w_ref, b_ref = wb[2 * i], wb[2 * i + 1]
        y = jnp.dot(h.astype(w_ref.dtype), w_ref[...],
                    preferred_element_type=jnp.float32)      # MXU, f32 accumulate
        y = y + b_ref[...]                                   # fused bias (f32)
        if act == "leaky_relu":
            y = jnp.where(y > 0, y, 0.01 * y)                # nn.LeakyReLU(0.01)
        elif act == "sigmoid":
            y = jax.nn.sigmoid(y)                            # EUP exp path, f32
        h = y
    o_ref[...] = h.astype(o_ref.dtype)


def _round_up(n, m):
    return ((n + m - 1) // m) * m


@functools.partial(jax.jit, static_argnames=("batch_tile",))
def autoencoder_forward(x, dense_params, batch_tile=256):
    """x: (N, C, H, W) float32 in NCHW (PyTorch layout)."""
    n = x.shape[0]
    c, h, w = INPUT_DIM
    f_in = c * h * w
    f_out = dense_params[-2].shape[1]

    x2 = x.reshape(n, f_in).astype(jnp.float32)   # NCHW flatten (metadata only)
    tb = min(batch_tile, _round_up(n, 8))         # sublane-aligned batch tile
    n_pad = _round_up(n, tb)
    if n_pad != n:
        x2 = jnp.pad(x2, ((0, n_pad - n), (0, 0)))

    in_specs = [pl.BlockSpec((tb, f_in), lambda i: (i, 0))]
    # Weights/biases: full array, constant block index -> resident in VMEM
    # across the whole batch grid (no per-step re-fetch).
    in_specs += [pl.BlockSpec(p.shape, lambda i: (0, 0)) for p in dense_params]

    out = pl.pallas_call(
        _fused_ae_kernel,
        out_shape=jax.ShapeDtypeStruct((n_pad, f_out), jnp.float32),
        grid_spec=pltpu.PrefetchScalarGridSpec(
            num_scalar_prefetch=0,
            grid=(n_pad // tb,),
            in_specs=in_specs,
            out_specs=pl.BlockSpec((tb, f_out), lambda i: (i, 0)),
        ),
        compiler_params=pltpu.CompilerParams(
            dimension_semantics=("parallel",)),   # v7x: shard batch over 2 TCs
    )(x2, *dense_params)

    return out[:n].reshape(n, c, h, w)            # C=1 -> pure metadata reshape


# ----------------------------------------------------------------------------
# Parameters (PyTorch layouts) and a pure-XLA f32 reference for validation.
# ----------------------------------------------------------------------------
def init_params(key):
    """Conv2d weight (Cout, Cin, k, k); ConvTranspose2d weight (Cin, Cout, k, k);
    Linear weights stored as (in, out) (transpose of torch's (out, in))."""
    enc, sbf, dec = _derive_arch()
    flat = int(np.prod(sbf))
    keys = iter(jax.random.split(key, 2 * (len(enc) + len(dec)) + 4))

    def draw(shape, fan_in):
        return jax.random.normal(next(keys), shape, jnp.float32) / np.sqrt(fan_in)

    p = {}
    for i, (cin, cout, k, s, pad, sp) in enumerate(enc):
        p[f"conv{i+1}_w"] = draw((cout, cin, k, k), cin * k * k)
        p[f"conv{i+1}_b"] = draw((cout,), cin * k * k)
    p["enc_lin_w"] = draw((flat, Z_DIM), flat)
    p["enc_lin_b"] = draw((Z_DIM,), flat)
    p["dec_lin_w"] = draw((Z_DIM, flat), Z_DIM)
    p["dec_lin_b"] = draw((flat,), Z_DIM)
    for i, (cin, cout, k, s, pad, op, sp) in enumerate(dec):
        p[f"convt{i+1}_w"] = draw((cin, cout, k, k), cin * k * k)
        p[f"convt{i+1}_b"] = draw((cout,), cin * k * k)
    return p


def _ref_conv2d(x, w, b, stride, padding):
    y = jax.lax.conv_general_dilated(
        x, w, window_strides=(stride, stride), padding=[(padding, padding)] * 2,
        dimension_numbers=("NCHW", "OIHW", "NCHW"),
        precision=jax.lax.Precision.HIGHEST)
    return y + b.reshape(1, -1, 1, 1)


def _ref_conv_transpose2d(x, w, b, stride, padding, output_padding):
    k = w.shape[2]
    w_conv = jnp.flip(w, (2, 3)).transpose(1, 0, 2, 3)       # (Cout, Cin, k, k)
    lo = k - 1 - padding
    hi = k - 1 - padding + output_padding
    y = jax.lax.conv_general_dilated(
        x, w_conv, window_strides=(1, 1), padding=[(lo, hi)] * 2,
        lhs_dilation=(stride, stride),
        dimension_numbers=("NCHW", "OIHW", "NCHW"),
        precision=jax.lax.Precision.HIGHEST)
    return y + b.reshape(1, -1, 1, 1)


def reference_forward(x, params):
    """Pure-JAX/XLA f32 reference of AutoEncoder.forward."""
    enc, sbf, dec = _derive_arch()
    lrelu = lambda t: jnp.where(t > 0, t, 0.01 * t)
    h = x
    for i, (cin, cout, k, s, p, sp) in enumerate(enc):
        h = lrelu(_ref_conv2d(h, params[f"conv{i+1}_w"], params[f"conv{i+1}_b"], s, p))
    n = h.shape[0]
    z = jnp.dot(h.reshape(n, -1), params["enc_lin_w"],
                precision=jax.lax.Precision.HIGHEST) + params["enc_lin_b"]
    d = jnp.dot(z, params["dec_lin_w"],
                precision=jax.lax.Precision.HIGHEST) + params["dec_lin_b"]
    d = d.reshape(n, *sbf)
    for i, (cin, cout, k, s, p, op, sp) in enumerate(dec):
        d = _ref_conv_transpose2d(d, params[f"convt{i+1}_w"],
                                  params[f"convt{i+1}_b"], s, p, op)
        d = lrelu(d) if i < len(dec) - 1 else jax.nn.sigmoid(d)
    return d


if __name__ == "__main__":
    root = jax.random.PRNGKey(0)
    k_x, k_p = jax.random.split(root)
    x = jax.random.uniform(k_x, (2, *INPUT_DIM), jnp.float32)   # NCHW, batch=2
    params = init_params(k_p)

    dense_params = prepare_dense_params(params)    # one-time weight folding
    out = autoencoder_forward(x, dense_params)
    out = jax.block_until_ready(out)

    assert out.shape == (2, *INPUT_DIM), out.shape
    assert out.dtype == jnp.float32
    assert bool(jnp.all(jnp.isfinite(out)))
    assert bool(jnp.all((out >= 0.0) & (out <= 1.0)))   # sigmoid output range

    # Validate against a pure-XLA f32 reference (bf16 MXU inputs => loose tol).
    ref = jax.block_until_ready(reference_forward(x, params))
    max_err = float(jnp.max(jnp.abs(out - ref)))
    assert max_err < 5e-2, max_err

    print("KERNEL_OK")
</pallas_src>

<mosaic_0001>
module attributes {stable_mosaic.version = 11 : i64} {
  func.func @_fused_ae_kernel(%arg0: i32, %arg1: memref<8x256xf32, #tpu.memory_space<vmem>>, %arg2: memref<256x256xbf16, #tpu.memory_space<vmem>>, %arg3: memref<1x256xf32, #tpu.memory_space<vmem>>, %arg4: memref<256x128xbf16, #tpu.memory_space<vmem>>, %arg5: memref<1x128xf32, #tpu.memory_space<vmem>>, %arg6: memref<128x8xbf16, #tpu.memory_space<vmem>>, %arg7: memref<1x8xf32, #tpu.memory_space<vmem>>, %arg8: memref<8x128xbf16, #tpu.memory_space<vmem>>, %arg9: memref<1x128xf32, #tpu.memory_space<vmem>>, %arg10: memref<128x256xbf16, #tpu.memory_space<vmem>>, %arg11: memref<1x256xf32, #tpu.memory_space<vmem>>, %arg12: memref<256x256xbf16, #tpu.memory_space<vmem>>, %arg13: memref<1x256xf32, #tpu.memory_space<vmem>>, %arg14: memref<8x256xf32, #tpu.memory_space<vmem>>) attributes {dimension_semantics = [#tpu.dimension_semantics<parallel>], iteration_bounds = array<i64: 1>, scalar_prefetch = 0 : i64, scratch_operands = 0 : i64, tpu.core_type = #tpu.core_type<tc>, window_params = [{transform_indices = @transform_0, window_bounds = array<i64: 8, 256>}, {pipeline_mode = #tpu.pipeline_mode<synchronous>, transform_indices = @transform_1, window_bounds = array<i64: 256, 256>}, {pipeline_mode = #tpu.pipeline_mode<synchronous>, transform_indices = @transform_2, window_bounds = array<i64: 1, 256>}, {pipeline_mode = #tpu.pipeline_mode<synchronous>, transform_indices = @transform_3, window_bounds = array<i64: 256, 128>}, {pipeline_mode = #tpu.pipeline_mode<synchronous>, transform_indices = @transform_4, window_bounds = array<i64: 1, 128>}, {pipeline_mode = #tpu.pipeline_mode<synchronous>, transform_indices = @transform_5, window_bounds = array<i64: 128, 8>}, {pipeline_mode = #tpu.pipeline_mode<synchronous>, transform_indices = @transform_6, window_bounds = array<i64: 1, 8>}, {pipeline_mode = #tpu.pipeline_mode<synchronous>, transform_indices = @transform_7, window_bounds = array<i64: 8, 128>}, {pipeline_mode = #tpu.pipeline_mode<synchronous>, transform_indices = @transform_8, window_bounds = array<i64: 1, 128>}, {pipeline_mode = #tpu.pipeline_mode<synchronous>, transform_indices = @transform_9, window_bounds = array<i64: 128, 256>}, {pipeline_mode = #tpu.pipeline_mode<synchronous>, transform_indices = @transform_10, window_bounds = array<i64: 1, 256>}, {pipeline_mode = #tpu.pipeline_mode<synchronous>, transform_indices = @transform_11, window_bounds = array<i64: 256, 256>}, {pipeline_mode = #tpu.pipeline_mode<synchronous>, transform_indices = @transform_12, window_bounds = array<i64: 1, 256>}, {transform_indices = @transform_13, window_bounds = array<i64: 8, 256>}]} {
    %c0 = arith.constant 0 : index
    %c0_0 = arith.constant 0 : index
    %0 = vector.load %arg1[%c0, %c0_0] : memref<8x256xf32, #tpu.memory_space<vmem>>, vector<8x256xf32>
    %1 = arith.truncf %0 : vector<8x256xf32> to vector<8x256xbf16>
    %c0_1 = arith.constant 0 : index
    %c0_2 = arith.constant 0 : index
    %2 = vector.load %arg2[%c0_1, %c0_2] : memref<256x256xbf16, #tpu.memory_space<vmem>>, vector<256x256xbf16>
    %cst = arith.constant dense<0.000000e+00> : vector<8x256xf32>
    %3 = tpu.matmul %1, %2, %cst {dimension_numbers = #tpu.dot_dimension_numbers<[1], [0], [0], [1], [0, 0, 1, 1], [], []>} : vector<8x256xbf16>, vector<256x256xbf16>, vector<8x256xf32> -> vector<8x256xf32>
    %c0_3 = arith.constant 0 : index
    %c0_4 = arith.constant 0 : index
    %4 = vector.load %arg3[%c0_3, %c0_4] : memref<1x256xf32, #tpu.memory_space<vmem>>, vector<1x256xf32>
    %5 = vector.broadcast %4 : vector<1x256xf32> to vector<8x256xf32>
    %6 = arith.addf %3, %5 : vector<8x256xf32>
    %cst_5 = arith.constant 0.000000e+00 : f32
    %7 = vector.broadcast %cst_5 : f32 to vector<8x256xf32>
    %8 = arith.cmpf ogt, %6, %7 : vector<8x256xf32>
    %cst_6 = arith.constant 0.00999999977 : f32
    %9 = vector.broadcast %cst_6 : f32 to vector<8x256xf32>
    %10 = arith.mulf %9, %6 : vector<8x256xf32>
    %11 = arith.select %8, %6, %10 : vector<8x256xi1>, vector<8x256xf32>
    %12 = arith.truncf %11 : vector<8x256xf32> to vector<8x256xbf16>
    %c0_7 = arith.constant 0 : index
    %c0_8 = arith.constant 0 : index
    %13 = vector.load %arg4[%c0_7, %c0_8] : memref<256x128xbf16, #tpu.memory_space<vmem>>, vector<256x128xbf16>
    %cst_9 = arith.constant dense<0.000000e+00> : vector<8x128xf32>
    %14 = tpu.matmul %12, %13, %cst_9 {dimension_numbers = #tpu.dot_dimension_numbers<[1], [0], [0], [1], [0, 0, 1, 1], [], []>} : vector<8x256xbf16>, vector<256x128xbf16>, vector<8x128xf32> -> vector<8x128xf32>
    %c0_10 = arith.constant 0 : index
    %c0_11 = arith.constant 0 : index
    %15 = vector.load %arg5[%c0_10, %c0_11] : memref<1x128xf32, #tpu.memory_space<vmem>>, vector<1x128xf32>
    %16 = vector.broadcast %15 : vector<1x128xf32> to vector<8x128xf32>
    %17 = arith.addf %14, %16 : vector<8x128xf32>
    %cst_12 = arith.constant 0.000000e+00 : f32
    %18 = vector.broadcast %cst_12 : f32 to vector<8x128xf32>
    %19 = arith.cmpf ogt, %17, %18 : vector<8x128xf32>
    %cst_13 = arith.constant 0.00999999977 : f32
    %20 = vector.broadcast %cst_13 : f32 to vector<8x128xf32>
    %21 = arith.mulf %20, %17 : vector<8x128xf32>
    %22 = arith.select %19, %17, %21 : vector<8x128xi1>, vector<8x128xf32>
    %23 = arith.truncf %22 : vector<8x128xf32> to vector<8x128xbf16>
    %c0_14 = arith.constant 0 : index
    %c0_15 = arith.constant 0 : index
    %24 = vector.load %arg6[%c0_14, %c0_15] : memref<128x8xbf16, #tpu.memory_space<vmem>>, vector<128x8xbf16>
    %cst_16 = arith.constant dense<0.000000e+00> : vector<8x8xf32>
    %25 = tpu.matmul %23, %24, %cst_16 {dimension_numbers = #tpu.dot_dimension_numbers<[1], [0], [0], [1], [0, 0, 1, 1], [], []>} : vector<8x128xbf16>, vector<128x8xbf16>, vector<8x8xf32> -> vector<8x8xf32>
    %c0_17 = arith.constant 0 : index
    %c0_18 = arith.constant 0 : index
    %26 = vector.load %arg7[%c0_17, %c0_18] : memref<1x8xf32, #tpu.memory_space<vmem>>, vector<1x8xf32>
    %27 = vector.broadcast %26 : vector<1x8xf32> to vector<8x8xf32>
    %28 = arith.addf %25, %27 : vector<8x8xf32>
    %29 = arith.truncf %28 : vector<8x8xf32> to vector<8x8xbf16>
    %c0_19 = arith.constant 0 : index
    %c0_20 = arith.constant 0 : index
    %30 = vector.load %arg8[%c0_19, %c0_20] : memref<8x128xbf16, #tpu.memory_space<vmem>>, vector<8x128xbf16>
    %cst_21 = arith.constant dense<0.000000e+00> : vector<8x128xf32>
    %31 = tpu.matmul %29, %30, %cst_21 {dimension_numbers = #tpu.dot_dimension_numbers<[1], [0], [0], [1], [0, 0, 1, 1], [], []>} : vector<8x8xbf16>, vector<8x128xbf16>, vector<8x128xf32> -> vector<8x128xf32>
    %c0_22 = arith.constant 0 : index
    %c0_23 = arith.constant 0 : index
    %32 = vector.load %arg9[%c0_22, %c0_23] : memref<1x128xf32, #tpu.memory_space<vmem>>, vector<1x128xf32>
    %33 = vector.broadcast %32 : vector<1x128xf32> to vector<8x128xf32>
    %34 = arith.addf %31, %33 : vector<8x128xf32>
    %35 = arith.truncf %34 : vector<8x128xf32> to vector<8x128xbf16>
    %c0_24 = arith.constant 0 : index
    %c0_25 = arith.constant 0 : index
    %36 = vector.load %arg10[%c0_24, %c0_25] : memref<128x256xbf16, #tpu.memory_space<vmem>>, vector<128x256xbf16>
    %cst_26 = arith.constant dense<0.000000e+00> : vector<8x256xf32>
    %37 = tpu.matmul %35, %36, %cst_26 {dimension_numbers = #tpu.dot_dimension_numbers<[1], [0], [0], [1], [0, 0, 1, 1], [], []>} : vector<8x128xbf16>, vector<128x256xbf16>, vector<8x256xf32> -> vector<8x256xf32>
    %c0_27 = arith.constant 0 : index
    %c0_28 = arith.constant 0 : index
    %38 = vector.load %arg11[%c0_27, %c0_28] : memref<1x256xf32, #tpu.memory_space<vmem>>, vector<1x256xf32>
    %39 = vector.broadcast %38 : vector<1x256xf32> to vector<8x256xf32>
    %40 = arith.addf %37, %39 : vector<8x256xf32>
    %cst_29 = arith.constant 0.000000e+00 : f32
    %41 = vector.broadcast %cst_29 : f32 to vector<8x256xf32>
    %42 = arith.cmpf ogt, %40, %41 : vector<8x256xf32>
    %cst_30 = arith.constant 0.00999999977 : f32
    %43 = vector.broadcast %cst_30 : f32 to vector<8x256xf32>
    %44 = arith.mulf %43, %40 : vector<8x256xf32>
    %45 = arith.select %42, %40, %44 : vector<8x256xi1>, vector<8x256xf32>
    %46 = arith.truncf %45 : vector<8x256xf32> to vector<8x256xbf16>
    %c0_31 = arith.constant 0 : index
    %c0_32 = arith.constant 0 : index
    %47 = vector.load %arg12[%c0_31, %c0_32] : memref<256x256xbf16, #tpu.memory_space<vmem>>, vector<256x256xbf16>
    %cst_33 = arith.constant dense<0.000000e+00> : vector<8x256xf32>
    %48 = tpu.matmul %46, %47, %cst_33 {dimension_numbers = #tpu.dot_dimension_numbers<[1], [0], [0], [1], [0, 0, 1, 1], [], []>} : vector<8x256xbf16>, vector<256x256xbf16>, vector<8x256xf32> -> vector<8x256xf32>
    %c0_34 = arith.constant 0 : index
    %c0_35 = arith.constant 0 : index
    %49 = vector.load %arg13[%c0_34, %c0_35] : memref<1x256xf32, #tpu.memory_space<vmem>>, vector<1x256xf32>
    %50 = vector.broadcast %49 : vector<1x256xf32> to vector<8x256xf32>
    %51 = arith.addf %48, %50 : vector<8x256xf32>
    %52 = arith.negf %51 : vector<8x256xf32>
    %53 = math.exp %52 : vector<8x256xf32>
    %cst_36 = arith.constant 1.000000e+00 : f32
    %54 = vector.broadcast %cst_36 : f32 to vector<8x256xf32>
    %55 = arith.addf %54, %53 : vector<8x256xf32>
    %56 = arith.divf %54, %55 : vector<8x256xf32>
    %c0_37 = arith.constant 0 : index
    %c0_38 = arith.constant 0 : index
    %57 = vector.load %arg14[%c0_37, %c0_38] : memref<8x256xf32, #tpu.memory_space<vmem>>, vector<8x256xf32>
    tpu.vector_store %arg14[%c0_37, %c0_38], %56 {strides = array<i32>} : memref<8x256xf32, #tpu.memory_space<vmem>>, vector<8x256xf32>,
    return
  }
  func.func @transform_0(%arg0: i32) -> (i32, i32) {
    %c0_i32 = arith.constant 0 : i32
    %c0_i32_0 = arith.constant 0 : i32
    return %arg0, %c0_i32 : i32, i32
  }
  func.func @transform_1(%arg0: i32) -> (i32, i32) {
    %c0_i32 = arith.constant 0 : i32
    %c0_i32_0 = arith.constant 0 : i32
    %c0_i32_1 = arith.constant 0 : i32
    return %c0_i32, %c0_i32_0 : i32, i32
  }
  func.func @transform_2(%arg0: i32) -> (i32, i32) {
    %c0_i32 = arith.constant 0 : i32
    %c0_i32_0 = arith.constant 0 : i32
    %c0_i32_1 = arith.constant 0 : i32
    return %c0_i32, %c0_i32_0 : i32, i32
  }
  func.func @transform_3(%arg0: i32) -> (i32, i32) {
    %c0_i32 = arith.constant 0 : i32
    %c0_i32_0 = arith.constant 0 : i32
    %c0_i32_1 = arith.constant 0 : i32
    return %c0_i32, %c0_i32_0 : i32, i32
  }
  func.func @transform_4(%arg0: i32) -> (i32, i32) {
    %c0_i32 = arith.constant 0 : i32
    %c0_i32_0 = arith.constant 0 : i32
    %c0_i32_1 = arith.constant 0 : i32
    return %c0_i32, %c0_i32_0 : i32, i32
  }
  func.func @transform_5(%arg0: i32) -> (i32, i32) {
    %c0_i32 = arith.constant 0 : i32
    %c0_i32_0 = arith.constant 0 : i32
    %c0_i32_1 = arith.constant 0 : i32
    return %c0_i32, %c0_i32_0 : i32, i32
  }
  func.func @transform_6(%arg0: i32) -> (i32, i32) {
    %c0_i32 = arith.constant 0 : i32
    %c0_i32_0 = arith.constant 0 : i32
    %c0_i32_1 = arith.constant 0 : i32
    return %c0_i32, %c0_i32_0 : i32, i32
  }
  func.func @transform_7(%arg0: i32) -> (i32, i32) {
    %c0_i32 = arith.constant 0 : i32
    %c0_i32_0 = arith.constant 0 : i32
    %c0_i32_1 = arith.constant 0 : i32
    return %c0_i32, %c0_i32_0 : i32, i32
  }
  func.func @transform_8(%arg0: i32) -> (i32, i32) {
    %c0_i32 = arith.constant 0 : i32
    %c0_i32_0 = arith.constant 0 : i32
    %c0_i32_1 = arith.constant 0 : i32
    return %c0_i32, %c0_i32_0 : i32, i32
  }
  func.func @transform_9(%arg0: i32) -> (i32, i32) {
    %c0_i32 = arith.constant 0 : i32
    %c0_i32_0 = arith.constant 0 : i32
    %c0_i32_1 = arith.constant 0 : i32
    return %c0_i32, %c0_i32_0 : i32, i32
  }
  func.func @transform_10(%arg0: i32) -> (i32, i32) {
    %c0_i32 = arith.constant 0 : i32
    %c0_i32_0 = arith.constant 0 : i32
    %c0_i32_1 = arith.constant 0 : i32
    return %c0_i32, %c0_i32_0 : i32, i32
  }
  func.func @transform_11(%arg0: i32) -> (i32, i32) {
    %c0_i32 = arith.constant 0 : i32
    %c0_i32_0 = arith.constant 0 : i32
    %c0_i32_1 = arith.constant 0 : i32
    return %c0_i32, %c0_i32_0 : i32, i32
  }
  func.func @transform_12(%arg0: i32) -> (i32, i32) {
    %c0_i32 = arith.constant 0 : i32
    %c0_i32_0 = arith.constant 0 : i32
    %c0_i32_1 = arith.constant 0 : i32
    return %c0_i32, %c0_i32_0 : i32, i32
  }
  func.func @transform_13(%arg0: i32) -> (i32, i32) {
    %c0_i32 = arith.constant 0 : i32
    %c0_i32_0 = arith.constant 0 : i32
    return %arg0, %c0_i32 : i32, i32
  }
}

</mosaic_0001>

<llo_original>
// kernel: autoencoder_forward.1
$region0: #{autoencoder_forward.1}
  #allocation0 [shape = 'u32[]', space=smem, size = 0x4, offset = 0x4, fixed_abs, tag = 'smem constant byte address 0x4 - core index']
  #allocation1 [shape = 'u32[144,128]{1,0:T(1,128)}', space=vmem, size = 0x12000, scoped, tag = 'internal scratch']
  %s0 = inlined_call_operand.vmem [shape: f32[8,256], index: 0, kind: input, shape index: {}]
  %s1 = inlined_call_operand.hbm [shape: bf16[256,256], index: 1, kind: input, shape index: {}]
  %s2 = inlined_call_operand.vmem [shape: f32[1,256], index: 2, kind: input, shape index: {}]
  %s3 = inlined_call_operand.vmem [shape: bf16[256,128], index: 3, kind: input, shape index: {}]
  %s4 = inlined_call_operand.hbm [shape: f32[1,128], index: 4, kind: input, shape index: {}]
  %s5 = inlined_call_operand.vmem [shape: bf16[128,8], index: 5, kind: input, shape index: {}]
  %s6 = inlined_call_operand.vmem [shape: f32[1,8], index: 6, kind: input, shape index: {}]
  %s7 = inlined_call_operand.vmem [shape: bf16[8,128], index: 7, kind: input, shape index: {}]
  %s8 = inlined_call_operand.vmem [shape: f32[1,128], index: 8, kind: input, shape index: {}]
  %s9 = inlined_call_operand.hbm [shape: bf16[128,256], index: 9, kind: input, shape index: {}]
  %s10 = inlined_call_operand.vmem [shape: f32[1,256], index: 10, kind: input, shape index: {}]
  %s11 = inlined_call_operand.hbm [shape: bf16[256,256], index: 11, kind: input, shape index: {}]
  %s12 = inlined_call_operand.vmem [shape: f32[1,256], index: 12, kind: input, shape index: {}]
  %s13 = inlined_call_operand.vmem [shape: f32[8,256], index: 13, kind: output, shape index: {}]
  %s14 = sld [smem:[#allocation0]]
  $region78: #{autoencoder_forward.1} parent=0
    _
  %s16 = ssub.s32 1, %s14
  %s17 = scalar_select 0, %s16, %s14
  $region1: #{autoencoder_forward.1} parent=0
    #allocation2 [shape = 'u8[131072]{0}', space=vmem, size = 0x20000, scoped, tag = 'input window, operand 1, single buffered']
    #allocation3 [shape = 's32[1]{0}', space=sflag, size = 0x4, scoped, tag = 'scoped memory for autoencoder_forward.1']
    #allocation4 [shape = 'u8[512]{0}', space=vmem, size = 0x400, scoped, tag = 'input window, operand 4, single buffered']
    #allocation5 [shape = 's32[1]{0}', space=sflag, size = 0x4, scoped, tag = 'scoped memory for autoencoder_forward.1']
    #allocation6 [shape = 'u8[65536]{0}', space=vmem, size = 0x10000, scoped, tag = 'input window, operand 9, single buffered']
    #allocation7 [shape = 'u8[131072]{0}', space=vmem, size = 0x20000, scoped, tag = 'input window, operand 11, single buffered']
    #allocation8 [shape = 's32[1]{0}', space=sflag, size = 0x4, scoped, tag = 'scoped memory for autoencoder_forward.1']
    %18 = vsyncpa [#allocation3], 0
    %19 = vsyncpa [#allocation5], 0
    %20 = vsyncpa [#allocation8], 0
    // Predicated region
    $region2: #{autoencoder_forward.1} parent=1 // pred_check
      _
    $region3: #{autoencoder_forward.1} parent=1 // pred_check_branch
      %22 = sbr.rel (0) target = $region5
    $region4: #{autoencoder_forward.1} parent=1 // pred_region
      _
    $region5: #{autoencoder_forward.1} parent=1 // pred_fallthru
      _
    // Predicated region
    $region6: #{autoencoder_forward.1} parent=1 // pred_check
      _
    $region7: #{autoencoder_forward.1} parent=1 // pred_check_branch
      %24 = sbr.rel (0) target = $region9
    $region8: #{autoencoder_forward.1} parent=1 // pred_region
      %s26 = ssub.s32 4096, 4096
      %27 = vsyncadd [#allocation3], %s26
      %s28 = sshll.u32 [#allocation2], 4
      %s29 = int_to_ptr.vmem [resolvable:$true] %s28
      %34 = dma.hbm_to_vmem [thread:$0]  %s1, 4096, %s29, [#allocation3], 128, 128, 8
    $region9: #{autoencoder_forward.1} parent=1 // pred_fallthru
      _
    // Predicated region
    $region10: #{autoencoder_forward.1} parent=1 // pred_check
      _
    $region11: #{autoencoder_forward.1} parent=1 // pred_check_branch
      %36 = sbr.rel (0) target = $region13
    $region12: #{autoencoder_forward.1} parent=1 // pred_region
      _
    $region13: #{autoencoder_forward.1} parent=1 // pred_fallthru
      _
    // Predicated region
    $region14: #{autoencoder_forward.1} parent=1 // pred_check
      _
    $region15: #{autoencoder_forward.1} parent=1 // pred_check_branch
      %38 = sbr.rel (0) target = $region17
    $region16: #{autoencoder_forward.1} parent=1 // pred_region
      _
    $region17: #{autoencoder_forward.1} parent=1 // pred_fallthru
      _
    // Predicated region
    $region18: #{autoencoder_forward.1} parent=1 // pred_check
      _
    $region19: #{autoencoder_forward.1} parent=1 // pred_check_branch
      %40 = sbr.rel (0) target = $region21
    $region20: #{autoencoder_forward.1} parent=1 // pred_region
      %s42 = ssub.s32 16, 16
      %43 = vsyncadd [#allocation5], %s42
      %s45 = sshll.u32 [#allocation4], 4
      %s46 = int_to_ptr.vmem [resolvable:$true] %s45
      %48 = dma.hbm_to_vmem [thread:$0]  %s4, 16, %s46, [#allocation5]
    $region21: #{autoencoder_forward.1} parent=1 // pred_fallthru
      _
    // Predicated region
    $region22: #{autoencoder_forward.1} parent=1 // pred_check
      _
    $region23: #{autoencoder_forward.1} parent=1 // pred_check_branch
      %50 = sbr.rel (0) target = $region25
    $region24: #{autoencoder_forward.1} parent=1 // pred_region
      _
    $region25: #{autoencoder_forward.1} parent=1 // pred_fallthru
      _
    // Predicated region
    $region26: #{autoencoder_forward.1} parent=1 // pred_check
      _
    $region27: #{autoencoder_forward.1} parent=1 // pred_check_branch
      %52 = sbr.rel (0) target = $region29
    $region28: #{autoencoder_forward.1} parent=1 // pred_region
      _
    $region29: #{autoencoder_forward.1} parent=1 // pred_fallthru
      _
    // Predicated region
    $region30: #{autoencoder_forward.1} parent=1 // pred_check
      _
    $region31: #{autoencoder_forward.1} parent=1 // pred_check_branch
      %54 = sbr.rel (0) target = $region33
    $region32: #{autoencoder_forward.1} parent=1 // pred_region
      _
    $region33: #{autoencoder_forward.1} parent=1 // pred_fallthru
      _
    // Predicated region
    $region34: #{autoencoder_forward.1} parent=1 // pred_check
      _
    $region35: #{autoencoder_forward.1} parent=1 // pred_check_branch
      %56 = sbr.rel (0) target = $region37
    $region36: #{autoencoder_forward.1} parent=1 // pred_region
      _
    $region37: #{autoencoder_forward.1} parent=1 // pred_fallthru
      _
    // Predicated region
    $region38: #{autoencoder_forward.1} parent=1 // pred_check
      _
    $region39: #{autoencoder_forward.1} parent=1 // pred_check_branch
      %58 = sbr.rel (0) target = $region41
    $region40: #{autoencoder_forward.1} parent=1 // pred_region
      %s60 = ssub.s32 2048, 2048
      %61 = vsyncadd [#allocation5], %s60
      %s62 = sshll.u32 [#allocation6], 4
      %s63 = int_to_ptr.vmem [resolvable:$true] %s62
      %68 = dma.hbm_to_vmem [thread:$0]  %s9, 2048, %s63, [#allocation5], 128, 128, 8
    $region41: #{autoencoder_forward.1} parent=1 // pred_fallthru
      _
    // Predicated region
    $region42: #{autoencoder_forward.1} parent=1 // pred_check
      _
    $region43: #{autoencoder_forward.1} parent=1 // pred_check_branch
      %70 = sbr.rel (0) target = $region45
    $region44: #{autoencoder_forward.1} parent=1 // pred_region
      _
    $region45: #{autoencoder_forward.1} parent=1 // pred_fallthru
      _
    // Predicated region
    $region46: #{autoencoder_forward.1} parent=1 // pred_check
      _
    $region47: #{autoencoder_forward.1} parent=1 // pred_check_branch
      %72 = sbr.rel (0) target = $region49
    $region48: #{autoencoder_forward.1} parent=1 // pred_region
      %s74 = ssub.s32 4096, 4096
      %75 = vsyncadd [#allocation8], %s74
      %s76 = sshll.u32 [#allocation7], 4
      %s77 = int_to_ptr.vmem [resolvable:$true] %s76
      %82 = dma.hbm_to_vmem [thread:$0]  %s11, 4096, %s77, [#allocation8], 128, 128, 8
    $region49: #{autoencoder_forward.1} parent=1 // pred_fallthru
      _
    // Predicated region
    $region50: #{autoencoder_forward.1} parent=1 // pred_check
      _
    $region51: #{autoencoder_forward.1} parent=1 // pred_check_branch
      %84 = sbr.rel (0) target = $region53
    $region52: #{autoencoder_forward.1} parent=1 // pred_region
      _
    $region53: #{autoencoder_forward.1} parent=1 // pred_fallthru
      _
    // Predicated region
    $region54: #{autoencoder_forward.1} parent=1 // pred_check
      _
    $region55: #{autoencoder_forward.1} parent=1 // pred_check_branch
      %86 = sbr.rel (0) target = $region57
    $region56: #{autoencoder_forward.1} parent=1 // pred_region
      %87 = dma.done [#allocation3], 4096
    $region57: #{autoencoder_forward.1} parent=1 // pred_fallthru
      _
    // Predicated region
    $region58: #{autoencoder_forward.1} parent=1 // pred_check
      _
    $region59: #{autoencoder_forward.1} parent=1 // pred_check_branch
      %89 = sbr.rel (0) target = $region61
    $region60: #{autoencoder_forward.1} parent=1 // pred_region
      %90 = dma.done [#allocation5], 16
    $region61: #{autoencoder_forward.1} parent=1 // pred_fallthru
      _
    // Predicated region
    $region62: #{autoencoder_forward.1} parent=1 // pred_check
      _
    $region63: #{autoencoder_forward.1} parent=1 // pred_check_branch
      %92 = sbr.rel (0) target = $region65
    $region64: #{autoencoder_forward.1} parent=1 // pred_region
      %93 = dma.done [#allocation5], 2048
    $region65: #{autoencoder_forward.1} parent=1 // pred_fallthru
      _
    // Predicated region
    $region66: #{autoencoder_forward.1} parent=1 // pred_check
      _
    $region67: #{autoencoder_forward.1} parent=1 // pred_check_branch
      %95 = sbr.rel (0) target = $region69
    $region68: #{autoencoder_forward.1} parent=1 // pred_region
      %96 = dma.done [#allocation8], 4096
    $region69: #{autoencoder_forward.1} parent=1 // pred_fallthru
      _
    %v98 = vld [vmem:[%s0] sm:$0xff]
    %v99 = vld [vmem:[%s0 + $0x8] sm:$0xff]
    %v100 = vpack.c.bf16 %v98, %v98
    %v101 = vpack.c.bf16 %v99, %v99
    %v102 = vld [vmem:[#allocation2] sm:$0xff]
    %v103 = vld [vmem:[#allocation2 + $0x8] sm:$0xff]
    %v104 = vld [vmem:[#allocation2 + $0x10] sm:$0xff]
    %v105 = vld [vmem:[#allocation2 + $0x18] sm:$0xff]
    %v106 = vld [vmem:[#allocation2 + $0x20] sm:$0xff]
    %v107 = vld [vmem:[#allocation2 + $0x28] sm:$0xff]
    %v108 = vld [vmem:[#allocation2 + $0x30] sm:$0xff]
    %v109 = vld [vmem:[#allocation2 + $0x38] sm:$0xff]
    %v110 = vld [vmem:[#allocation2 + $0x40] sm:$0xff]
    %v111 = vld [vmem:[#allocation2 + $0x48] sm:$0xff]
    %v112 = vld [vmem:[#allocation2 + $0x50] sm:$0xff]
    %v113 = vld [vmem:[#allocation2 + $0x58] sm:$0xff]
    %v114 = vld [vmem:[#allocation2 + $0x60] sm:$0xff]
    %v115 = vld [vmem:[#allocation2 + $0x68] sm:$0xff]
    %v116 = vld [vmem:[#allocation2 + $0x70] sm:$0xff]
    %v117 = vld [vmem:[#allocation2 + $0x78] sm:$0xff]
    %v118 = vld [vmem:[#allocation2 + $0x80] sm:$0xff]
    %v119 = vld [vmem:[#allocation2 + $0x88] sm:$0xff]
    %v120 = vld [vmem:[#allocation2 + $0x90] sm:$0xff]
    %v121 = vld [vmem:[#allocation2 + $0x98] sm:$0xff]
    %v122 = vld [vmem:[#allocation2 + $0xa0] sm:$0xff]
    %v123 = vld [vmem:[#allocation2 + $0xa8] sm:$0xff]
    %v124 = vld [vmem:[#allocation2 + $0xb0] sm:$0xff]
    %v125 = vld [vmem:[#allocation2 + $0xb8] sm:$0xff]
    %v126 = vld [vmem:[#allocation2 + $0xc0] sm:$0xff]
    %v127 = vld [vmem:[#allocation2 + $0xc8] sm:$0xff]
    %v128 = vld [vmem:[#allocation2 + $0xd0] sm:$0xff]
    %v129 = vld [vmem:[#allocation2 + $0xd8] sm:$0xff]
    %v130 = vld [vmem:[#allocation2 + $0xe0] sm:$0xff]
    %v131 = vld [vmem:[#allocation2 + $0xe8] sm:$0xff]
    %v132 = vld [vmem:[#allocation2 + $0xf0] sm:$0xff]
    %v133 = vld [vmem:[#allocation2 + $0xf8] sm:$0xff]
    %v134 = vld [vmem:[%s2] sm:$0x3]
    %v136 = vlaneseq
    %v137 = vshrl.u32 %v136, 7
    %v138 = vsub.s32 0, %v137
    %v139 = vrot.slane %v134, %v138
    %v140 = vlaneseq
    %v141 = vshrl.u32 %v140, 7
    %v142 = vsub.s32 1, %v141
    %v143 = vrot.slane %v134, %v142
    %v178 = vunpack.c.l.b16 %v102
    %v179 = vunpack.c.h.b16 %v102
    %v180 = vunpack.c.l.b16 %v103
    %v181 = vunpack.c.h.b16 %v103
    %v182 = vunpack.c.l.b16 %v104
    %v183 = vunpack.c.h.b16 %v104
    %v184 = vunpack.c.l.b16 %v105
    %v185 = vunpack.c.h.b16 %v105
    %v186 = vunpack.c.l.b16 %v106
    %v187 = vunpack.c.h.b16 %v106
    %v188 = vunpack.c.l.b16 %v107
    %v189 = vunpack.c.h.b16 %v107
    %v190 = vunpack.c.l.b16 %v108
    %v191 = vunpack.c.h.b16 %v108
    %v192 = vunpack.c.l.b16 %v109
    %v193 = vunpack.c.h.b16 %v109
    %v194 = vunpack.c.l.b16 %v110
    %v195 = vunpack.c.h.b16 %v110
    %v196 = vunpack.c.l.b16 %v111
    %v197 = vunpack.c.h.b16 %v111
    %v198 = vunpack.c.l.b16 %v112
    %v199 = vunpack.c.h.b16 %v112
    %v200 = vunpack.c.l.b16 %v113
    %v201 = vunpack.c.h.b16 %v113
    %v202 = vunpack.c.l.b16 %v114
    %v203 = vunpack.c.h.b16 %v114
    %v204 = vunpack.c.l.b16 %v115
    %v205 = vunpack.c.h.b16 %v115
    %v206 = vunpack.c.l.b16 %v116
    %v207 = vunpack.c.h.b16 %v116
    %v208 = vunpack.c.l.b16 %v117
    %v209 = vunpack.c.h.b16 %v117
    %v210 = vunpack.c.l.b16 %v118
    %v211 = vunpack.c.h.b16 %v118
    %v212 = vunpack.c.l.b16 %v119
    %v213 = vunpack.c.h.b16 %v119
    %v214 = vunpack.c.l.b16 %v120
    %v215 = vunpack.c.h.b16 %v120
    %v216 = vunpack.c.l.b16 %v121
    %v217 = vunpack.c.h.b16 %v121
    %v218 = vunpack.c.l.b16 %v122
    %v219 = vunpack.c.h.b16 %v122
    %v220 = vunpack.c.l.b16 %v123
    %v221 = vunpack.c.h.b16 %v123
    %v222 = vunpack.c.l.b16 %v124
    %v223 = vunpack.c.h.b16 %v124
    %v224 = vunpack.c.l.b16 %v125
    %v225 = vunpack.c.h.b16 %v125
    %v226 = vunpack.c.l.b16 %v126
    %v227 = vunpack.c.h.b16 %v126
    %v228 = vunpack.c.l.b16 %v127
    %v229 = vunpack.c.h.b16 %v127
    %v230 = vunpack.c.l.b16 %v128
    %v231 = vunpack.c.h.b16 %v128
    %v232 = vunpack.c.l.b16 %v129
    %v233 = vunpack.c.h.b16 %v129
    %v234 = vunpack.c.l.b16 %v130
    %v235 = vunpack.c.h.b16 %v130
    %v236 = vunpack.c.l.b16 %v131
    %v237 = vunpack.c.h.b16 %v131
    %v238 = vunpack.c.l.b16 %v132
    %v239 = vunpack.c.h.b16 %v132
    %v240 = vunpack.c.l.b16 %v133
    %v241 = vunpack.c.h.b16 %v133
    %v242 = vpack.c.b16 %v180, %v178
    %v243 = vpack.c.b16 %v181, %v179
    %v244 = vpack.c.b16 %v184, %v182
    %v245 = vpack.c.b16 %v185, %v183
    %v246 = vpack.c.b16 %v188, %v186
    %v247 = vpack.c.b16 %v189, %v187
    %v248 = vpack.c.b16 %v192, %v190
    %v249 = vpack.c.b16 %v193, %v191
    %v250 = vpack.c.b16 %v196, %v194
    %v251 = vpack.c.b16 %v197, %v195
    %v252 = vpack.c.b16 %v200, %v198
    %v253 = vpack.c.b16 %v201, %v199
    %v254 = vpack.c.b16 %v204, %v202
    %v255 = vpack.c.b16 %v205, %v203
    %v256 = vpack.c.b16 %v208, %v206
    %v257 = vpack.c.b16 %v209, %v207
    %v258 = vpack.c.b16 %v212, %v210
    %v259 = vpack.c.b16 %v213, %v211
    %v260 = vpack.c.b16 %v216, %v214
    %v261 = vpack.c.b16 %v217, %v215
    %v262 = vpack.c.b16 %v220, %v218
    %v263 = vpack.c.b16 %v221, %v219
    %v264 = vpack.c.b16 %v224, %v222
    %v265 = vpack.c.b16 %v225, %v223
    %v266 = vpack.c.b16 %v228, %v226
    %v267 = vpack.c.b16 %v229, %v227
    %v268 = vpack.c.b16 %v232, %v230
    %v269 = vpack.c.b16 %v233, %v231
    %v270 = vpack.c.b16 %v236, %v234
    %v271 = vpack.c.b16 %v237, %v235
    %v272 = vpack.c.b16 %v240, %v238
    %v273 = vpack.c.b16 %v241, %v239
    %306 = vmatprep.subr.bf16.mxu0 %v243
    %307 = vmatpush1.bf16.msra.mxu0 %v242
    %308 = vmatprep.subr.bf16.mxu0 %v245
    %309 = vmatpush1.bf16.msra.mxu0 %v244
    %310 = vmatprep.subr.bf16.mxu0 %v247
    %311 = vmatpush1.bf16.msra.mxu0 %v246
    %312 = vmatprep.subr.bf16.mxu0 %v249
    %313 = vmatpush1.bf16.msra.mxu0 %v248
    %314 = vmatprep.subr.bf16.mxu0 %v251
    %315 = vmatpush1.bf16.msra.mxu0 %v250
    %316 = vmatprep.subr.bf16.mxu0 %v253
    %317 = vmatpush1.bf16.msra.mxu0 %v252
    %318 = vmatprep.subr.bf16.mxu0 %v255
    %319 = vmatpush1.bf16.msra.mxu0 %v254
    %320 = vmatprep.subr.bf16.mxu0 %v257
    %321 = vmatpush1.bf16.msra.mxu0 %v256
    %322 = vmatprep.subr.bf16.mxu0 %v259
    %323 = vmatpush1.bf16.msra.mxu0 %v258
    %324 = vmatprep.subr.bf16.mxu0 %v261
    %325 = vmatpush1.bf16.msra.mxu0 %v260
    %326 = vmatprep.subr.bf16.mxu0 %v263
    %327 = vmatpush1.bf16.msra.mxu0 %v262
    %328 = vmatprep.subr.bf16.mxu0 %v265
    %329 = vmatpush1.bf16.msra.mxu0 %v264
    %330 = vmatprep.subr.bf16.mxu0 %v267
    %331 = vmatpush1.bf16.msra.mxu0 %v266
    %332 = vmatprep.subr.bf16.mxu0 %v269
    %333 = vmatpush1.bf16.msra.mxu0 %v268
    %334 = vmatprep.subr.bf16.mxu0 %v271
    %335 = vmatpush1.bf16.msra.mxu0 %v270
    %336 = vmatprep.subr.bf16.mxu0 %v273
    %337 = vmatpush1.bf16.msra.mxu0 %v272
    %338 = vmatprep.mubr.bf16.mxu0 %v101
    %339 = vmatmul.mubr.bf16.gmra.mrb[0].mxu0 %v100
    %v340 = vpop.f32.mrb[0].mxu0
    %v341 = vadd.f32 %v139, %v340
    %v342 = vpop.f32.mrb[0].mxu0
    %v343 = vadd.f32 %v143, %v342
    %v344 = vpop.f32.mrb[0].mxu0
    %v345 = vpop.f32.mrb[0].mxu0
    %346 = vdwg.mxu0
    %vm347 = vcmp.gt.f32.partialorder %v341, 0.0
    %vm348 = vcmp.gt.f32.partialorder %v343, 0.0
    %v349 = vmul.f32 %v341, 0.01
    %v350 = vmul.f32 %v343, 0.01
    %v351 = vsel %vm347, %v341, %v349
    %v352 = vsel %vm348, %v343, %v350
    %v353 = vpack.c.bf16 %v351, %v351
    %v354 = vpack.c.bf16 %v352, %v352
    %v355 = vld [vmem:[%s3] sm:$0xf]
    %v356 = vld [vmem:[%s3 + $0x4] sm:$0xf]
    %v357 = vld [vmem:[%s3 + $0x8] sm:$0xf]
    %v358 = vld [vmem:[%s3 + $0xc] sm:$0xf]
    %v359 = vld [vmem:[%s3 + $0x10] sm:$0xf]
    %v360 = vld [vmem:[%s3 + $0x14] sm:$0xf]
    %v361 = vld [vmem:[%s3 + $0x18] sm:$0xf]
    %v362 = vld [vmem:[%s3 + $0x1c] sm:$0xf]
    %v363 = vld [vmem:[%s3 + $0x20] sm:$0xf]
    %v364 = vld [vmem:[%s3 + $0x24] sm:$0xf]
    %v365 = vld [vmem:[%s3 + $0x28] sm:$0xf]
    %v366 = vld [vmem:[%s3 + $0x2c] sm:$0xf]
    %v367 = vld [vmem:[%s3 + $0x30] sm:$0xf]
    %v368 = vld [vmem:[%s3 + $0x34] sm:$0xf]
    %v369 = vld [vmem:[%s3 + $0x38] sm:$0xf]
    %v370 = vld [vmem:[%s3 + $0x3c] sm:$0xf]
    %v371 = vld [vmem:[%s3 + $0x40] sm:$0xf]
    %v372 = vld [vmem:[%s3 + $0x44] sm:$0xf]
    %v373 = vld [vmem:[%s3 + $0x48] sm:$0xf]
    %v374 = vld [vmem:[%s3 + $0x4c] sm:$0xf]
    %v375 = vld [vmem:[%s3 + $0x50] sm:$0xf]
    %v376 = vld [vmem:[%s3 + $0x54] sm:$0xf]
    %v377 = vld [vmem:[%s3 + $0x58] sm:$0xf]
    %v378 = vld [vmem:[%s3 + $0x5c] sm:$0xf]
    %v379 = vld [vmem:[%s3 + $0x60] sm:$0xf]
    %v380 = vld [vmem:[%s3 + $0x64] sm:$0xf]
    %v381 = vld [vmem:[%s3 + $0x68] sm:$0xf]
    %v382 = vld [vmem:[%s3 + $0x6c] sm:$0xf]
    %v383 = vld [vmem:[%s3 + $0x70] sm:$0xf]
    %v384 = vld [vmem:[%s3 + $0x74] sm:$0xf]
    %v385 = vld [vmem:[%s3 + $0x78] sm:$0xf]
    %v386 = vld [vmem:[%s3 + $0x7c] sm:$0xf]
    %v387 = vld [vmem:[#allocation4] sm:$0x1]
    %v389 = vlaneseq
    %v390 = vshrl.u32 %v389, 7
    %v391 = vsub.s32 0, %v390
    %v392 = vrot.slane %v387, %v391
    %v426 = vunpack.c.l.b16 %v355
    %v427 = vunpack.c.l.b16 %v356
    %v428 = vunpack.c.l.b16 %v357
    %v429 = vunpack.c.l.b16 %v358
    %v430 = vunpack.c.l.b16 %v359
    %v431 = vunpack.c.l.b16 %v360
    %v432 = vunpack.c.l.b16 %v361
    %v433 = vunpack.c.l.b16 %v362
    %v434 = vunpack.c.l.b16 %v363
    %v435 = vunpack.c.l.b16 %v364
    %v436 = vunpack.c.l.b16 %v365
    %v437 = vunpack.c.l.b16 %v366
    %v438 = vunpack.c.l.b16 %v367
    %v439 = vunpack.c.l.b16 %v368
    %v440 = vunpack.c.l.b16 %v369
    %v441 = vunpack.c.l.b16 %v370
    %v442 = vunpack.c.l.b16 %v371
    %v443 = vunpack.c.l.b16 %v372
    %v444 = vunpack.c.l.b16 %v373
    %v445 = vunpack.c.l.b16 %v374
    %v446 = vunpack.c.l.b16 %v375
    %v447 = vunpack.c.l.b16 %v376
    %v448 = vunpack.c.l.b16 %v377
    %v449 = vunpack.c.l.b16 %v378
    %v450 = vunpack.c.l.b16 %v379
    %v451 = vunpack.c.l.b16 %v380
    %v452 = vunpack.c.l.b16 %v381
    %v453 = vunpack.c.l.b16 %v382
    %v454 = vunpack.c.l.b16 %v383
    %v455 = vunpack.c.l.b16 %v384
    %v456 = vunpack.c.l.b16 %v385
    %v457 = vunpack.c.l.b16 %v386
    %v458 = vpack.c.b16 %v427, %v426
    %v459 = vpack.c.b16 %v429, %v428
    %v460 = vpack.c.b16 %v431, %v430
    %v461 = vpack.c.b16 %v433, %v432
    %v462 = vpack.c.b16 %v435, %v434
    %v463 = vpack.c.b16 %v437, %v436
    %v464 = vpack.c.b16 %v439, %v438
    %v465 = vpack.c.b16 %v441, %v440
    %v466 = vpack.c.b16 %v443, %v442
    %v467 = vpack.c.b16 %v445, %v444
    %v468 = vpack.c.b16 %v447, %v446
    %v469 = vpack.c.b16 %v449, %v448
    %v470 = vpack.c.b16 %v451, %v450
    %v471 = vpack.c.b16 %v453, %v452
    %v472 = vpack.c.b16 %v455, %v454
    %v473 = vpack.c.b16 %v457, %v456
    %490 = vmatprep.subr.bf16.mxu0 0
    %491 = vmatpush1.bf16.msra.mxu0 %v458
    %492 = vmatprep.subr.bf16.mxu0 0
    %493 = vmatpush1.bf16.msra.mxu0 %v459
    %494 = vmatprep.subr.bf16.mxu0 0
    %495 = vmatpush1.bf16.msra.mxu0 %v460
    %496 = vmatprep.subr.bf16.mxu0 0
    %497 = vmatpush1.bf16.msra.mxu0 %v461
    %498 = vmatprep.subr.bf16.mxu0 0
    %499 = vmatpush1.bf16.msra.mxu0 %v462
    %500 = vmatprep.subr.bf16.mxu0 0
    %501 = vmatpush1.bf16.msra.mxu0 %v463
    %502 = vmatprep.subr.bf16.mxu0 0
    %503 = vmatpush1.bf16.msra.mxu0 %v464
    %504 = vmatprep.subr.bf16.mxu0 0
    %505 = vmatpush1.bf16.msra.mxu0 %v465
    %506 = vmatprep.subr.bf16.mxu0 0
    %507 = vmatpush1.bf16.msra.mxu0 %v466
    %508 = vmatprep.subr.bf16.mxu0 0
    %509 = vmatpush1.bf16.msra.mxu0 %v467
    %510 = vmatprep.subr.bf16.mxu0 0
    %511 = vmatpush1.bf16.msra.mxu0 %v468
    %512 = vmatprep.subr.bf16.mxu0 0
    %513 = vmatpush1.bf16.msra.mxu0 %v469
    %514 = vmatprep.subr.bf16.mxu0 0
    %515 = vmatpush1.bf16.msra.mxu0 %v470
    %516 = vmatprep.subr.bf16.mxu0 0
    %517 = vmatpush1.bf16.msra.mxu0 %v471
    %518 = vmatprep.subr.bf16.mxu0 0
    %519 = vmatpush1.bf16.msra.mxu0 %v472
    %520 = vmatprep.subr.bf16.mxu0 0
    %521 = vmatpush1.bf16.msra.mxu0 %v473
    %522 = vmatprep.mubr.bf16.mxu0 %v354
    %523 = vmatmul.mubr.bf16.gmra.mrb[0].mxu0 %v353
    %v524 = vpop.f32.mrb[0].mxu0
    %v525 = vadd.f32 %v392, %v524
    %v526 = vpop.f32.mrb[0].mxu0
    %v527 = vpop.f32.mrb[0].mxu0
    %v528 = vpop.f32.mrb[0].mxu0
    %529 = vdwg.mxu0
    %vm530 = vcmp.gt.f32.partialorder %v525, 0.0
    %v531 = vmul.f32 %v525, 0.01
    %v532 = vsel %vm530, %v525, %v531
    %v533 = vpack.c.bf16 %v532, %v532
    %v534 = vld [vmem:[%s5] sm:$0xf]
    %v535 = vld [vmem:[%s5 + $0x4] sm:$0xf]
    %v536 = vld [vmem:[%s5 + $0x8] sm:$0xf]
    %v537 = vld [vmem:[%s5 + $0xc] sm:$0xf]
    %v538 = vld [vmem:[%s5 + $0x10] sm:$0xf]
    %v539 = vld [vmem:[%s5 + $0x14] sm:$0xf]
    %v540 = vld [vmem:[%s5 + $0x18] sm:$0xf]
    %v541 = vld [vmem:[%s5 + $0x1c] sm:$0xf]
    %v542 = vld [vmem:[%s5 + $0x20] sm:$0xf]
    %v543 = vld [vmem:[%s5 + $0x24] sm:$0xf]
    %v544 = vld [vmem:[%s5 + $0x28] sm:$0xf]
    %v545 = vld [vmem:[%s5 + $0x2c] sm:$0xf]
    %v546 = vld [vmem:[%s5 + $0x30] sm:$0xf]
    %v547 = vld [vmem:[%s5 + $0x34] sm:$0xf]
    %v548 = vld [vmem:[%s5 + $0x38] sm:$0xf]
    %v549 = vld [vmem:[%s5 + $0x3c] sm:$0xf]
    %v550 = vld [vmem:[%s6] sm:$0x1]
    %v552 = vlaneseq
    %v553 = vshrl.u32 %v552, 7
    %v554 = vsub.s32 0, %v553
    %v555 = vrot.slane %v550, %v554
    %v573 = vunpack.c.l.b16 %v534
    %v574 = vunpack.c.l.b16 %v535
    %v575 = vunpack.c.l.b16 %v536
    %v576 = vunpack.c.l.b16 %v537
    %v577 = vunpack.c.l.b16 %v538
    %v578 = vunpack.c.l.b16 %v539
    %v579 = vunpack.c.l.b16 %v540
    %v580 = vunpack.c.l.b16 %v541
    %v581 = vunpack.c.l.b16 %v542
    %v582 = vunpack.c.l.b16 %v543
    %v583 = vunpack.c.l.b16 %v544
    %v584 = vunpack.c.l.b16 %v545
    %v585 = vunpack.c.l.b16 %v546
    %v586 = vunpack.c.l.b16 %v547
    %v587 = vunpack.c.l.b16 %v548
    %v588 = vunpack.c.l.b16 %v549
    %v589 = vpack.c.b16 %v574, %v573
    %v590 = vpack.c.b16 %v576, %v575
    %v591 = vpack.c.b16 %v578, %v577
    %v592 = vpack.c.b16 %v580, %v579
    %v593 = vpack.c.b16 %v582, %v581
    %v594 = vpack.c.b16 %v584, %v583
    %v595 = vpack.c.b16 %v586, %v585
    %v596 = vpack.c.b16 %v588, %v587
    %605 = vmatprep.subr.bf16.mxu0 0
    %606 = vmatpush1.bf16.msra.mxu0 %v589
    %607 = vmatprep.subr.bf16.mxu0 0
    %608 = vmatpush1.bf16.msra.mxu0 %v590
    %609 = vmatprep.subr.bf16.mxu0 0
    %610 = vmatpush1.bf16.msra.mxu0 %v591
    %611 = vmatprep.subr.bf16.mxu0 0
    %612 = vmatpush1.bf16.msra.mxu0 %v592
    %613 = vmatprep.subr.bf16.mxu0 0
    %614 = vmatpush1.bf16.msra.mxu0 %v593
    %615 = vmatprep.subr.bf16.mxu0 0
    %616 = vmatpush1.bf16.msra.mxu0 %v594
    %617 = vmatprep.subr.bf16.mxu0 0
    %618 = vmatpush1.bf16.msra.mxu0 %v595
    %619 = vmatprep.subr.bf16.mxu0 0
    %620 = vmatpush1.bf16.msra.mxu0 %v596
    %621 = vmatprep.subr.bf16.mxu0 0
    %622 = vmatpush1.bf16.msra.mxu0 0
    %623 = vmatprep.subr.bf16.mxu0 0
    %624 = vmatpush1.bf16.msra.mxu0 0
    %625 = vmatprep.subr.bf16.mxu0 0
    %626 = vmatpush1.bf16.msra.mxu0 0
    %627 = vmatprep.subr.bf16.mxu0 0
    %628 = vmatpush1.bf16.msra.mxu0 0
    %629 = vmatprep.subr.bf16.mxu0 0
    %630 = vmatpush1.bf16.msra.mxu0 0
    %631 = vmatprep.subr.bf16.mxu0 0
    %632 = vmatpush1.bf16.msra.mxu0 0
    %633 = vmatprep.subr.bf16.mxu0 0
    %634 = vmatpush1.bf16.msra.mxu0 0
    %635 = vmatprep.subr.bf16.mxu0 0
    %636 = vmatpush1.bf16.msra.mxu0 0
    %637 = vmatprep.mubr.bf16.mxu0 0
    %638 = vmatmul.mubr.bf16.gmra.mrb[0].mxu0 %v533
    %v639 = vpop.f32.mrb[0].mxu0
    %v640 = vadd.f32 %v555, %v639
    %v641 = vpop.f32.mrb[0].mxu0
    %v642 = vpop.f32.mrb[0].mxu0
    %v643 = vpop.f32.mrb[0].mxu0
    %644 = vdwg.mxu0
    %v645 = vpack.c.bf16 %v640, %v640
    %v646 = vld [vmem:[%s7] sm:$0xf]
    %v647 = vld [vmem:[%s8] sm:$0x1]
    %v649 = vlaneseq
    %v650 = vshrl.u32 %v649, 7
    %v651 = vsub.s32 0, %v650
    %v652 = vrot.slane %v647, %v651
    %vm654 = vcmask 64512
    %v656 = vsel %vm654, %v645, 0
    %vm658 = vcmask 1043456
    %v660 = vsel %vm658, %v646, 0
    %662 = vmatprep.subr.bf16.mxu0 0
    %663 = vmatpush1.bf16.msra.mxu0 %v660
    %664 = vmatprep.subr.bf16.mxu0 0
    %665 = vmatpush1.bf16.msra.mxu0 0
    %666 = vmatprep.subr.bf16.mxu0 0
    %667 = vmatpush1.bf16.msra.mxu0 0
    %668 = vmatprep.subr.bf16.mxu0 0
    %669 = vmatpush1.bf16.msra.mxu0 0
    %670 = vmatprep.subr.bf16.mxu0 0
    %671 = vmatpush1.bf16.msra.mxu0 0
    %672 = vmatprep.subr.bf16.mxu0 0
    %673 = vmatpush1.bf16.msra.mxu0 0
    %674 = vmatprep.subr.bf16.mxu0 0
    %675 = vmatpush1.bf16.msra.mxu0 0
    %676 = vmatprep.subr.bf16.mxu0 0
    %677 = vmatpush1.bf16.msra.mxu0 0
    %678 = vmatprep.subr.bf16.mxu0 0
    %679 = vmatpush1.bf16.msra.mxu0 0
    %680 = vmatprep.subr.bf16.mxu0 0
    %681 = vmatpush1.bf16.msra.mxu0 0
    %682 = vmatprep.subr.bf16.mxu0 0
    %683 = vmatpush1.bf16.msra.mxu0 0
    %684 = vmatprep.subr.bf16.mxu0 0
    %685 = vmatpush1.bf16.msra.mxu0 0
    %686 = vmatprep.subr.bf16.mxu0 0
    %687 = vmatpush1.bf16.msra.mxu0 0
    %688 = vmatprep.subr.bf16.mxu0 0
    %689 = vmatpush1.bf16.msra.mxu0 0
    %690 = vmatprep.subr.bf16.mxu0 0
    %691 = vmatpush1.bf16.msra.mxu0 0
    %692 = vmatprep.subr.bf16.mxu0 0
    %693 = vmatpush1.bf16.msra.mxu0 0
    %694 = vmatprep.mubr.bf16.mxu0 0
    %695 = vmatmul.mubr.bf16.gmra.mrb[0].mxu0 %v656
    %v696 = vpop.f32.mrb[0].mxu0
    %v697 = vadd.f32 %v652, %v696
    %v698 = vpop.f32.mrb[0].mxu0
    %v699 = vpop.f32.mrb[0].mxu0
    %v700 = vpop.f32.mrb[0].mxu0
    %701 = vdwg.mxu0
    %v702 = vpack.c.bf16 %v697, %v697
    %v703 = vld [vmem:[#allocation6] sm:$0xff]
    %v704 = vld [vmem:[#allocation6 + $0x8] sm:$0xff]
    %v705 = vld [vmem:[#allocation6 + $0x10] sm:$0xff]
    %v706 = vld [vmem:[#allocation6 + $0x18] sm:$0xff]
    %v707 = vld [vmem:[#allocation6 + $0x20] sm:$0xff]
    %v708 = vld [vmem:[#allocation6 + $0x28] sm:$0xff]
    %v709 = vld [vmem:[#allocation6 + $0x30] sm:$0xff]
    %v710 = vld [vmem:[#allocation6 + $0x38] sm:$0xff]
    %v711 = vld [vmem:[#allocation6 + $0x40] sm:$0xff]
    %v712 = vld [vmem:[#allocation6 + $0x48] sm:$0xff]
    %v713 = vld [vmem:[#allocation6 + $0x50] sm:$0xff]
    %v714 = vld [vmem:[#allocation6 + $0x58] sm:$0xff]
    %v715 = vld [vmem:[#allocation6 + $0x60] sm:$0xff]
    %v716 = vld [vmem:[#allocation6 + $0x68] sm:$0xff]
    %v717 = vld [vmem:[#allocation6 + $0x70] sm:$0xff]
    %v718 = vld [vmem:[#allocation6 + $0x78] sm:$0xff]
    %v719 = vld [vmem:[%s10] sm:$0x3]
    %v721 = vlaneseq
    %v722 = vshrl.u32 %v721, 7
    %v723 = vsub.s32 0, %v722
    %v724 = vrot.slane %v719, %v723
    %v725 = vlaneseq
    %v726 = vshrl.u32 %v725, 7
    %v727 = vsub.s32 1, %v726
    %v728 = vrot.slane %v719, %v727
    %v747 = vunpack.c.l.b16 %v703
    %v748 = vunpack.c.h.b16 %v703
    %v749 = vunpack.c.l.b16 %v704
    %v750 = vunpack.c.h.b16 %v704
    %v751 = vunpack.c.l.b16 %v705
    %v752 = vunpack.c.h.b16 %v705
    %v753 = vunpack.c.l.b16 %v706
    %v754 = vunpack.c.h.b16 %v706
    %v755 = vunpack.c.l.b16 %v707
    %v756 = vunpack.c.h.b16 %v707
    %v757 = vunpack.c.l.b16 %v708
    %v758 = vunpack.c.h.b16 %v708
    %v759 = vunpack.c.l.b16 %v709
    %v760 = vunpack.c.h.b16 %v709
    %v761 = vunpack.c.l.b16 %v710
    %v762 = vunpack.c.h.b16 %v710
    %v763 = vunpack.c.l.b16 %v711
    %v764 = vunpack.c.h.b16 %v711
    %v765 = vunpack.c.l.b16 %v712
    %v766 = vunpack.c.h.b16 %v712
    %v767 = vunpack.c.l.b16 %v713
    %v768 = vunpack.c.h.b16 %v713
    %v769 = vunpack.c.l.b16 %v714
    %v770 = vunpack.c.h.b16 %v714
    %v771 = vunpack.c.l.b16 %v715
    %v772 = vunpack.c.h.b16 %v715
    %v773 = vunpack.c.l.b16 %v716
    %v774 = vunpack.c.h.b16 %v716
    %v775 = vunpack.c.l.b16 %v717
    %v776 = vunpack.c.h.b16 %v717
    %v777 = vunpack.c.l.b16 %v718
    %v778 = vunpack.c.h.b16 %v718
    %v779 = vpack.c.b16 %v749, %v747
    %v780 = vpack.c.b16 %v750, %v748
    %v781 = vpack.c.b16 %v753, %v751
    %v782 = vpack.c.b16 %v754, %v752
    %v783 = vpack.c.b16 %v757, %v755
    %v784 = vpack.c.b16 %v758, %v756
    %v785 = vpack.c.b16 %v761, %v759
    %v786 = vpack.c.b16 %v762, %v760
    %v787 = vpack.c.b16 %v765, %v763
    %v788 = vpack.c.b16 %v766, %v764
    %v789 = vpack.c.b16 %v769, %v767
    %v790 = vpack.c.b16 %v770, %v768
    %v791 = vpack.c.b16 %v773, %v771
    %v792 = vpack.c.b16 %v774, %v772
    %v793 = vpack.c.b16 %v777, %v775
    %v794 = vpack.c.b16 %v778, %v776
    %811 = vmatprep.subr.bf16.mxu0 %v780
    %812 = vmatpush1.bf16.msra.mxu0 %v779
    %813 = vmatprep.subr.bf16.mxu0 %v782
    %814 = vmatpush1.bf16.msra.mxu0 %v781
    %815 = vmatprep.subr.bf16.mxu0 %v784
    %816 = vmatpush1.bf16.msra.mxu0 %v783
    %817 = vmatprep.subr.bf16.mxu0 %v786
    %818 = vmatpush1.bf16.msra.mxu0 %v785
    %819 = vmatprep.subr.bf16.mxu0 %v788
    %820 = vmatpush1.bf16.msra.mxu0 %v787
    %821 = vmatprep.subr.bf16.mxu0 %v790
    %822 = vmatpush1.bf16.msra.mxu0 %v789
    %823 = vmatprep.subr.bf16.mxu0 %v792
    %824 = vmatpush1.bf16.msra.mxu0 %v791
    %825 = vmatprep.subr.bf16.mxu0 %v794
    %826 = vmatpush1.bf16.msra.mxu0 %v793
    %827 = vmatprep.subr.bf16.mxu0 0
    %828 = vmatpush1.bf16.msra.mxu0 0
    %829 = vmatprep.subr.bf16.mxu0 0
    %830 = vmatpush1.bf16.msra.mxu0 0
    %831 = vmatprep.subr.bf16.mxu0 0
    %832 = vmatpush1.bf16.msra.mxu0 0
    %833 = vmatprep.subr.bf16.mxu0 0
    %834 = vmatpush1.bf16.msra.mxu0 0
    %835 = vmatprep.subr.bf16.mxu0 0
    %836 = vmatpush1.bf16.msra.mxu0 0
    %837 = vmatprep.subr.bf16.mxu0 0
    %838 = vmatpush1.bf16.msra.mxu0 0
    %839 = vmatprep.subr.bf16.mxu0 0
    %840 = vmatpush1.bf16.msra.mxu0 0
    %841 = vmatprep.subr.bf16.mxu0 0
    %842 = vmatpush1.bf16.msra.mxu0 0
    %843 = vmatprep.mubr.bf16.mxu0 0
    %844 = vmatmul.mubr.bf16.gmra.mrb[0].mxu0 %v702
    %v845 = vpop.f32.mrb[0].mxu0
    %v846 = vadd.f32 %v724, %v845
    %v847 = vpop.f32.mrb[0].mxu0
    %v848 = vadd.f32 %v728, %v847
    %v849 = vpop.f32.mrb[0].mxu0
    %v850 = vpop.f32.mrb[0].mxu0
    %851 = vdwg.mxu0
    %vm852 = vcmp.gt.f32.partialorder %v846, 0.0
    %vm853 = vcmp.gt.f32.partialorder %v848, 0.0
    %v854 = vmul.f32 %v846, 0.01
    %v855 = vmul.f32 %v848, 0.01
    %v856 = vsel %vm852, %v846, %v854
    %v857 = vsel %vm853, %v848, %v855
    %v858 = vpack.c.bf16 %v856, %v856
    %v859 = vpack.c.bf16 %v857, %v857
    %v860 = vld [vmem:[#allocation7] sm:$0xff]
    %v861 = vld [vmem:[#allocation7 + $0x8] sm:$0xff]
    %v862 = vld [vmem:[#allocation7 + $0x10] sm:$0xff]
    %v863 = vld [vmem:[#allocation7 + $0x18] sm:$0xff]
    %v864 = vld [vmem:[#allocation7 + $0x20] sm:$0xff]
    %v865 = vld [vmem:[#allocation7 + $0x28] sm:$0xff]
    %v866 = vld [vmem:[#allocation7 + $0x30] sm:$0xff]
    %v867 = vld [vmem:[#allocation7 + $0x38] sm:$0xff]
    %v868 = vld [vmem:[#allocation7 + $0x40] sm:$0xff]
    %v869 = vld [vmem:[#allocation7 + $0x48] sm:$0xff]
    %v870 = vld [vmem:[#allocation7 + $0x50] sm:$0xff]
    %v871 = vld [vmem:[#allocation7 + $0x58] sm:$0xff]
    %v872 = vld [vmem:[#allocation7 + $0x60] sm:$0xff]
    %v873 = vld [vmem:[#allocation7 + $0x68] sm:$0xff]
    %v874 = vld [vmem:[#allocation7 + $0x70] sm:$0xff]
    %v875 = vld [vmem:[#allocation7 + $0x78] sm:$0xff]
    %v876 = vld [vmem:[#allocation7 + $0x80] sm:$0xff]
    %v877 = vld [vmem:[#allocation7 + $0x88] sm:$0xff]
    %v878 = vld [vmem:[#allocation7 + $0x90] sm:$0xff]
    %v879 = vld [vmem:[#allocation7 + $0x98] sm:$0xff]
    %v880 = vld [vmem:[#allocation7 + $0xa0] sm:$0xff]
    %v881 = vld [vmem:[#allocation7 + $0xa8] sm:$0xff]
    %v882 = vld [vmem:[#allocation7 + $0xb0] sm:$0xff]
    %v883 = vld [vmem:[#allocation7 + $0xb8] sm:$0xff]
    %v884 = vld [vmem:[#allocation7 + $0xc0] sm:$0xff]
    %v885 = vld [vmem:[#allocation7 + $0xc8] sm:$0xff]
    %v886 = vld [vmem:[#allocation7 + $0xd0] sm:$0xff]
    %v887 = vld [vmem:[#allocation7 + $0xd8] sm:$0xff]
    %v888 = vld [vmem:[#allocation7 + $0xe0] sm:$0xff]
    %v889 = vld [vmem:[#allocation7 + $0xe8] sm:$0xff]
    %v890 = vld [vmem:[#allocation7 + $0xf0] sm:$0xff]
    %v891 = vld [vmem:[#allocation7 + $0xf8] sm:$0xff]
    %v892 = vld [vmem:[%s12] sm:$0x3]
    %v894 = vlaneseq
    %v895 = vshrl.u32 %v894, 7
    %v896 = vsub.s32 0, %v895
    %v897 = vrot.slane %v892, %v896
    %v898 = vlaneseq
    %v899 = vshrl.u32 %v898, 7
    %v900 = vsub.s32 1, %v899
    %v901 = vrot.slane %v892, %v900
    %v936 = vunpack.c.l.b16 %v860
    %v937 = vunpack.c.h.b16 %v860
    %v938 = vunpack.c.l.b16 %v861
    %v939 = vunpack.c.h.b16 %v861
    %v940 = vunpack.c.l.b16 %v862
    %v941 = vunpack.c.h.b16 %v862
    %v942 = vunpack.c.l.b16 %v863
    %v943 = vunpack.c.h.b16 %v863
    %v944 = vunpack.c.l.b16 %v864
    %v945 = vunpack.c.h.b16 %v864
    %v946 = vunpack.c.l.b16 %v865
    %v947 = vunpack.c.h.b16 %v865
    %v948 = vunpack.c.l.b16 %v866
    %v949 = vunpack.c.h.b16 %v866
    %v950 = vunpack.c.l.b16 %v867
    %v951 = vunpack.c.h.b16 %v867
    %v952 = vunpack.c.l.b16 %v868
    %v953 = vunpack.c.h.b16 %v868
    %v954 = vunpack.c.l.b16 %v869
    %v955 = vunpack.c.h.b16 %v869
    %v956 = vunpack.c.l.b16 %v870
    %v957 = vunpack.c.h.b16 %v870
    %v958 = vunpack.c.l.b16 %v871
    %v959 = vunpack.c.h.b16 %v871
    %v960 = vunpack.c.l.b16 %v872
    %v961 = vunpack.c.h.b16 %v872
    %v962 = vunpack.c.l.b16 %v873
    %v963 = vunpack.c.h.b16 %v873
    %v964 = vunpack.c.l.b16 %v874
    %v965 = vunpack.c.h.b16 %v874
    %v966 = vunpack.c.l.b16 %v875
    %v967 = vunpack.c.h.b16 %v875
    %v968 = vunpack.c.l.b16 %v876
    %v969 = vunpack.c.h.b16 %v876
    %v970 = vunpack.c.l.b16 %v877
    %v971 = vunpack.c.h.b16 %v877
    %v972 = vunpack.c.l.b16 %v878
    %v973 = vunpack.c.h.b16 %v878
    %v974 = vunpack.c.l.b16 %v879
    %v975 = vunpack.c.h.b16 %v879
    %v976 = vunpack.c.l.b16 %v880
    %v977 = vunpack.c.h.b16 %v880
    %v978 = vunpack.c.l.b16 %v881
    %v979 = vunpack.c.h.b16 %v881
    %v980 = vunpack.c.l.b16 %v882
    %v981 = vunpack.c.h.b16 %v882
    %v982 = vunpack.c.l.b16 %v883
    %v983 = vunpack.c.h.b16 %v883
    %v984 = vunpack.c.l.b16 %v884
    %v985 = vunpack.c.h.b16 %v884
    %v986 = vunpack.c.l.b16 %v885
    %v987 = vunpack.c.h.b16 %v885
    %v988 = vunpack.c.l.b16 %v886
    %v989 = vunpack.c.h.b16 %v886
    %v990 = vunpack.c.l.b16 %v887
    %v991 = vunpack.c.h.b16 %v887
    %v992 = vunpack.c.l.b16 %v888
    %v993 = vunpack.c.h.b16 %v888
    %v994 = vunpack.c.l.b16 %v889
    %v995 = vunpack.c.h.b16 %v889
    %v996 = vunpack.c.l.b16 %v890
    %v997 = vunpack.c.h.b16 %v890
    %v998 = vunpack.c.l.b16 %v891
    %v999 = vunpack.c.h.b16 %v891
    %v1000 = vpack.c.b16 %v938, %v936
    %v1001 = vpack.c.b16 %v939, %v937
    %v1002 = vpack.c.b16 %v942, %v940
    %v1003 = vpack.c.b16 %v943, %v941
    %v1004 = vpack.c.b16 %v946, %v944
    %v1005 = vpack.c.b16 %v947, %v945
    %v1006 = vpack.c.b16 %v950, %v948
    %v1007 = vpack.c.b16 %v951, %v949
    %v1008 = vpack.c.b16 %v954, %v952
    %v1009 = vpack.c.b16 %v955, %v953
    %v1010 = vpack.c.b16 %v958, %v956
    %v1011 = vpack.c.b16 %v959, %v957
    %v1012 = vpack.c.b16 %v962, %v960
    %v1013 = vpack.c.b16 %v963, %v961
    %v1014 = vpack.c.b16 %v966, %v964
    %v1015 = vpack.c.b16 %v967, %v965
    %v1016 = vpack.c.b16 %v970, %v968
    %v1017 = vpack.c.b16 %v971, %v969
    %v1018 = vpack.c.b16 %v974, %v972
    %v1019 = vpack.c.b16 %v975, %v973
    %v1020 = vpack.c.b16 %v978, %v976
    %v1021 = vpack.c.b16 %v979, %v977
    %v1022 = vpack.c.b16 %v982, %v980
    %v1023 = vpack.c.b16 %v983, %v981
    %v1024 = vpack.c.b16 %v986, %v984
    %v1025 = vpack.c.b16 %v987, %v985
    %v1026 = vpack.c.b16 %v990, %v988
    %v1027 = vpack.c.b16 %v991, %v989
    %v1028 = vpack.c.b16 %v994, %v992
    %v1029 = vpack.c.b16 %v995, %v993
    %v1030 = vpack.c.b16 %v998, %v996
    %v1031 = vpack.c.b16 %v999, %v997
    %1064 = vmatprep.subr.bf16.mxu0 %v1001
    %1065 = vmatpush1.bf16.msra.mxu0 %v1000
    %1066 = vmatprep.subr.bf16.mxu0 %v1003
    %1067 = vmatpush1.bf16.msra.mxu0 %v1002
    %1068 = vmatprep.subr.bf16.mxu0 %v1005
    %1069 = vmatpush1.bf16.msra.mxu0 %v1004
    %1070 = vmatprep.subr.bf16.mxu0 %v1007
    %1071 = vmatpush1.bf16.msra.mxu0 %v1006
    %1072 = vmatprep.subr.bf16.mxu0 %v1009
    %1073 = vmatpush1.bf16.msra.mxu0 %v1008
    %1074 = vmatprep.subr.bf16.mxu0 %v1011
    %1075 = vmatpush1.bf16.msra.mxu0 %v1010
    %1076 = vmatprep.subr.bf16.mxu0 %v1013
    %1077 = vmatpush1.bf16.msra.mxu0 %v1012
    %1078 = vmatprep.subr.bf16.mxu0 %v1015
    %1079 = vmatpush1.bf16.msra.mxu0 %v1014
    %1080 = vmatprep.subr.bf16.mxu0 %v1017
    %1081 = vmatpush1.bf16.msra.mxu0 %v1016
    %1082 = vmatprep.subr.bf16.mxu0 %v1019
    %1083 = vmatpush1.bf16.msra.mxu0 %v1018
    %1084 = vmatprep.subr.bf16.mxu0 %v1021
    %1085 = vmatpush1.bf16.msra.mxu0 %v1020
    %1086 = vmatprep.subr.bf16.mxu0 %v1023
    %1087 = vmatpush1.bf16.msra.mxu0 %v1022
    %1088 = vmatprep.subr.bf16.mxu0 %v1025
    %1089 = vmatpush1.bf16.msra.mxu0 %v1024
    %1090 = vmatprep.subr.bf16.mxu0 %v1027
    %1091 = vmatpush1.bf16.msra.mxu0 %v1026
    %1092 = vmatprep.subr.bf16.mxu0 %v1029
    %1093 = vmatpush1.bf16.msra.mxu0 %v1028
    %1094 = vmatprep.subr.bf16.mxu0 %v1031
    %1095 = vmatpush1.bf16.msra.mxu0 %v1030
    %1096 = vmatprep.mubr.bf16.mxu0 %v859
    %1097 = vmatmul.mubr.bf16.gmra.mrb[0].mxu0 %v858
    %v1098 = vpop.f32.mrb[0].mxu0
    %v1099 = vadd.f32 %v897, %v1098
    %v1100 = vpop.f32.mrb[0].mxu0
    %v1101 = vadd.f32 %v901, %v1100
    %v1102 = vpop.f32.mrb[0].mxu0
    %v1103 = vpop.f32.mrb[0].mxu0
    %1104 = vdwg.mxu0
    %v1105 = vxor.u32 %v1099, 2147483648
    %v1106 = vxor.u32 %v1101, 2147483648
    %v1107 = vmul.f32 %v1105, 1.442695
    %v1108 = vpow.pop %v1107
    %v1109 = vmul.f32 %v1106, 1.442695
    %v1110 = vpow.pop %v1109
    %v1111 = vadd.f32 %v1108, 1.0
    %v1112 = vadd.f32 %v1110, 1.0
    %v1113 = vrcp.pop %v1111
    %v1114 = vmul.f32 1.0, %v1113
    %v1115 = vrcp.pop %v1112
    %v1116 = vmul.f32 1.0, %v1115
    %1117 = vst [vmem:[%s13] sm:$0xff] %v1114
    %1118 = vst [vmem:[%s13 + $0x8] sm:$0xff] %v1116
    // Predicated region
    $region70: #{autoencoder_forward.1} parent=1 // pred_check
      _
    $region71: #{autoencoder_forward.1} parent=1 // pred_check_branch
      %1120 = sbr.rel (0) target = $region73
    $region72: #{autoencoder_forward.1} parent=1 // pred_region
      _
    $region73: #{autoencoder_forward.1} parent=1 // pred_fallthru
      _
    // Predicated region
    $region74: #{autoencoder_forward.1} parent=1 // pred_check
      _
    $region75: #{autoencoder_forward.1} parent=1 // pred_check_branch
      %1122 = sbr.rel (0) target = $region77
    $region76: #{autoencoder_forward.1} parent=1 // pred_region
      _
    $region77: #{autoencoder_forward.1} parent=1 // pred_fallthru
      _
    %1123 = vsyncpa [#allocation3], 1
    %1124 = vsyncpa [#allocation5], 1
    %1125 = vsyncpa [#allocation8], 1

</llo_original>
